<compile_context>
chip_gen: v7x
topology: tpu7x:2x2x1
jax: 0.10.0
libtpu: 0.0.40
codegen_flags: <defaults>
</compile_context>

<pallas_src>
import functools

import jax
import jax.numpy as jnp
from jax import lax
from jax.experimental import pallas as pl
from jax.experimental.pallas import tpu as pltpu

# ---- small, deterministic sizes consistent with the module ----
B = 2                     # batch
HW = 16                   # spatial (gating reshape requires input_size == H**2, i.e. C == 1)
INPUT_SIZE = HW * HW      # 256 (K dim of first matmul, multiple of 128 -> MXU friendly)
HIDDEN = 32
OUTPUT = 16
NUM_EXPERTS = 8
TOP_K = 4
LOSS_COEF = 0.01
LANES = 128

# lane layout of the fused first-matmul output z (and of the output slab)
H_OFF = 0                 # expert-0 hidden pre-activations: lanes [0, 32)
GATE_OFF = 32             # gating logits / gates:           lanes [32, 40)
LOSS_LANE = 48            # loss scalar broadcast lane (output slab only)

# row layout of the packed bf16 parameter slab [SLAB_ROWS, 128]
WA_ROWS = INPUT_SIZE      # rows [  0, 256): W_A  (w1 at lanes [0,32), w_gate at [32,40))
WB_OFF = WA_ROWS          # rows [256, 304): W_B  (48 rows; w2 in rows [0,32) x lanes [0,16))
WB_ROWS = 48
B1_ROW = 304              # single bias rows at 16-aligned offsets (bf16 sublane tile = 16)
B2_ROW = 320
SLAB_ROWS = 336

# Output slab layout ([B, 128] f32): lanes [0,16)=y, [32,40)=gates, lane 48=loss.


def moe_kernel(x_ref, slab_ref, out_ref, *, loss_coef):
    f32 = jnp.float32
    bf16 = jnp.bfloat16

    x = x_ref[...].astype(bf16)                                   # [B, 256]
    w_a = slab_ref[0:WA_ROWS, :]                                  # [256, 128] bf16
    w_b = slab_ref[WB_OFF:WB_OFF + WB_ROWS, :]                    # [48, 128]  bf16
    b1 = slab_ref[B1_ROW:B1_ROW + 1, :].astype(f32)               # [1, 128]
    b2 = slab_ref[B2_ROW:B2_ROW + 1, :].astype(f32)               # [1, 128]

    lane = lax.broadcasted_iota(jnp.int32, (1, LANES), 1)         # [1, 128]
    lane_f = lane.astype(f32)
    gate_mask = (lane >= GATE_OFF) & (lane < GATE_OFF + NUM_EXPERTS)
    gate_mask_f = gate_mask.astype(f32)

    # ---- fused MXU pass #1: expert-0 hidden pre-acts (lanes [0,32)) + gating logits ([32,40))
    z = jnp.dot(x, w_a, preferred_element_type=f32)               # [B, 128]

    # ---- expert 0: y = relu(x@w1 + b1) @ w2 + b2
    # relu(logits) at lanes [32,40) hits all-zero W_B rows -> no effect on y.
    h = jnp.maximum(z + b1, 0.0)                                  # [B, 128]
    y = jnp.dot(h[:, :WB_ROWS].astype(bf16), w_b,
                preferred_element_type=f32) + b2                  # [B, 128]; lanes [16,128) == 0

    # ---- noisy_top_k_gating (noisy_gating=False path): top-k over the 8 logit lanes
    # TODO(synk): composite-key single-reduce top-k (review item #6) intentionally skipped;
    # the kernel is overhead/DMA bound at this size, so these reduces are not the bottleneck.
    neg_inf = float("-inf")
    work = jnp.where(gate_mask, z, neg_inf)                       # [B, 128]
    vals, idxs = [], []
    for _ in range(TOP_K):                                        # k=4, unrolled at trace time
        m_j = jnp.max(work, axis=-1, keepdims=True)               # [B, 1]
        # lowest-index tie-break (matches lax.top_k / torch.topk CPU ordering for exact ties)
        idx_j = jnp.min(jnp.where(work == m_j, lane_f, float(LANES)),
                        axis=-1, keepdims=True)                   # [B, 1] (small ints, exact in f32)
        vals.append(m_j)
        idxs.append(idx_j)
        work = jnp.where(lane_f == idx_j, neg_inf, work)

    # softmax over the k selected logits (vals[0] is the per-row max)
    exps = [jnp.exp(v - vals[0]) for v in vals]
    denom = exps[0]
    for e in exps[1:]:
        denom = denom + e

    # scatter the k mixture weights straight onto the gate lanes [32, 40)
    gates = jnp.zeros_like(z)
    for j in range(TOP_K):
        gates = gates + jnp.where(lane_f == idxs[j], exps[j] / denom, 0.0)

    # ---- load-balancing loss, fused statistics:
    # pack gates (lanes [32,40)) and the load indicator (rolled by 64 -> lanes [96,104),
    # half-width shift so the result is independent of roll direction) so that importance
    # and load fall out of ONE sublane reduce; then both cv_squared terms share 2 lane
    # reduces on a stacked [2, 128] row pair.
    ind = (gates > 0.0).astype(f32)
    col = jnp.sum(gates + pltpu.roll(ind, 64, 1), axis=0, keepdims=True)          # [1, 128]
    packed = jnp.concatenate([col, pltpu.roll(col, 64, 1)], axis=0) * gate_mask_f  # [2, 128]
    s = jnp.sum(packed, axis=-1, keepdims=True)                                    # [2, 1]
    mean = s / float(NUM_EXPERTS)
    diff = (packed - mean) * gate_mask_f
    # torch.var default is unbiased (ddof=1); E==1 guard unnecessary (NUM_EXPERTS=8, static)
    var = jnp.sum(diff * diff, axis=-1, keepdims=True) / float(NUM_EXPERTS - 1)    # [2, 1]
    cv_sq = var / (mean * mean + 1e-10)
    loss = jnp.sum(cv_sq, axis=0, keepdims=True) * loss_coef                       # [1, 1]

    # ---- single lane-dense full-width store: y | gates | loss
    out_ref[...] = y + gates + jnp.where(lane == LOSS_LANE, loss, 0.0)


def pack_moe_params(w_gate, w1, b1, w2, b2):
    """Pack all parameters into ONE lane-dense bf16 [336, 128] slab.

    Call once when the weights are created/updated -- NOT per forward call."""
    bf16 = jnp.bfloat16
    slab = jnp.zeros((SLAB_ROWS, LANES), bf16)
    slab = slab.at[:WA_ROWS, H_OFF:H_OFF + HIDDEN].set(w1.astype(bf16))
    slab = slab.at[:WA_ROWS, GATE_OFF:GATE_OFF + NUM_EXPERTS].set(w_gate.astype(bf16))
    slab = slab.at[WB_OFF:WB_OFF + HIDDEN, :OUTPUT].set(w2.astype(bf16))
    slab = slab.at[B1_ROW, H_OFF:H_OFF + HIDDEN].set(b1.reshape(HIDDEN).astype(bf16))
    slab = slab.at[B2_ROW, :OUTPUT].set(b2.reshape(OUTPUT).astype(bf16))
    return slab


def moe_forward(x_nchw, slab, loss_coef=LOSS_COEF):
    b_, c_, h_, w_ = x_nchw.shape
    assert c_ * h_ * w_ == h_ * h_, "gating reshape assumes input_size == H**2 (C == 1)"
    assert slab.shape == (SLAB_ROWS, LANES) and slab.dtype == jnp.bfloat16

    x_flat = x_nchw.reshape(b_, c_ * h_ * w_)        # metadata-only reshape; no host pad

    out = pl.pallas_call(
        functools.partial(moe_kernel, loss_coef=loss_coef),
        out_shape=jax.ShapeDtypeStruct((b_, LANES), jnp.float32),
        in_specs=[pl.BlockSpec(memory_space=pltpu.MemorySpace.VMEM),
                  pl.BlockSpec(memory_space=pltpu.MemorySpace.VMEM)],
        out_specs=pl.BlockSpec(memory_space=pltpu.MemorySpace.VMEM),
        # TODO(synk): at realistic batch sizes, add a grid over >=128-row batch tiles with
        # dimension_semantics=("parallel",) and a constant index_map for the slab so the
        # weights stay VMEM-resident while only x/out stream (uses both v7x TensorCores
        # and amortizes v5e MXU weight pushes).
    )(x_flat, slab)

    y = out[:, :OUTPUT]
    gates = out[:, GATE_OFF:GATE_OFF + NUM_EXPERTS]
    loss = out[0, LOSS_LANE]
    # NOTE: the PyTorch forward discards `loss`/`gates` and returns only experts[0](x).
    return y, gates, loss


if __name__ == "__main__":
    key = jax.random.PRNGKey(0)
    kx, k1, k2, k3, k4, k5 = jax.random.split(key, 6)

    x = jax.random.normal(kx, (B, 1, HW, HW), dtype=jnp.float32)

    # Expert-0 (Net) parameters, deterministic random init.
    w1 = jax.random.normal(k1, (INPUT_SIZE, HIDDEN), dtype=jnp.float32) * 0.05
    b1 = jax.random.normal(k2, (1, HIDDEN), dtype=jnp.float32) * 0.05
    w2 = jax.random.normal(k3, (HIDDEN, OUTPUT), dtype=jnp.float32) * 0.05
    b2 = jax.random.normal(k4, (1, OUTPUT), dtype=jnp.float32) * 0.05

    fwd = jax.jit(moe_forward)

    def reference(xa, w_gate):
        # Pure-JAX reference mirroring the kernel's bf16 parameter/activation rounding
        # (f32 accumulation on both sides).
        bf = lambda a: a.astype(jnp.bfloat16).astype(jnp.float32)
        xf = bf(xa.reshape(B, -1))
        h = jnp.maximum(xf @ bf(w1) + bf(b1), 0.0)
        y = bf(h) @ bf(w2) + bf(b2)
        logits = xf @ bf(w_gate)
        top_v, top_i = lax.top_k(logits, TOP_K)
        g = jax.nn.softmax(top_v, axis=1)
        gates = jnp.einsum("bk,bke->be", g, jax.nn.one_hot(top_i, NUM_EXPERTS))
        imp = gates.sum(0)
        load = (gates > 0).sum(0).astype(jnp.float32)
        cv = lambda v: jnp.var(v, ddof=1) / (jnp.mean(v) ** 2 + 1e-10)
        loss = LOSS_COEF * (cv(imp) + cv(load))
        return y, gates, loss

    # Case 1: module as defined -- w_gate is zero-initialized (nn.Parameter(torch.zeros(...))).
    w_gate_zero = jnp.zeros((INPUT_SIZE, NUM_EXPERTS), dtype=jnp.float32)
    # Case 2: nonzero gate weights, to exercise the top-k / softmax / scatter / loss path.
    w_gate_rand = jax.random.normal(k5, (INPUT_SIZE, NUM_EXPERTS), dtype=jnp.float32) * 0.05

    for w_gate in (w_gate_zero, w_gate_rand):
        slab = pack_moe_params(w_gate, w1, b1, w2, b2)   # packed ONCE per weight set
        y, gates, loss = fwd(x, slab)
        jax.block_until_ready((y, gates, loss))
        assert y.shape == (B, OUTPUT)

        y_ref, gates_ref, loss_ref = reference(x, w_gate)
        # y tolerance covers bf16 re-rounding of h near rounding boundaries (MXU vs XLA order).
        assert jnp.allclose(y, y_ref, atol=5e-3, rtol=5e-3)
        assert jnp.allclose(gates, gates_ref, atol=1e-4)
        assert jnp.allclose(loss, loss_ref, atol=1e-4)

    print("KERNEL_OK")
</pallas_src>

<mosaic_0001>
module attributes {stable_mosaic.version = 11 : i64} {
  func.func @moe_kernel(%arg0: memref<2x256xf32, #tpu.memory_space<vmem>>, %arg1: memref<336x128xbf16, #tpu.memory_space<vmem>>, %arg2: memref<2x128xf32, #tpu.memory_space<vmem>>) attributes {dimension_semantics = [], scalar_prefetch = 0 : i64, scratch_operands = 0 : i64, tpu.core_type = #tpu.core_type<tc>} {
    %c0 = arith.constant 0 : index
    %c0_0 = arith.constant 0 : index
    %0 = vector.load %arg0[%c0, %c0_0] : memref<2x256xf32, #tpu.memory_space<vmem>>, vector<2x256xf32>
    %1 = arith.truncf %0 : vector<2x256xf32> to vector<2x256xbf16>
    %c0_1 = arith.constant 0 : index
    %c0_2 = arith.constant 0 : index
    %2 = vector.load %arg1[%c0_1, %c0_2] : memref<336x128xbf16, #tpu.memory_space<vmem>>, vector<256x128xbf16>
    %c256 = arith.constant 256 : index
    %c0_3 = arith.constant 0 : index
    %3 = vector.load %arg1[%c256, %c0_3] : memref<336x128xbf16, #tpu.memory_space<vmem>>, vector<48x128xbf16>
    %c304 = arith.constant 304 : index
    %c0_4 = arith.constant 0 : index
    %4 = vector.load %arg1[%c304, %c0_4] : memref<336x128xbf16, #tpu.memory_space<vmem>>, vector<1x128xbf16>
    %5 = arith.extf %4 : vector<1x128xbf16> to vector<1x128xf32>
    %c320 = arith.constant 320 : index
    %c0_5 = arith.constant 0 : index
    %6 = vector.load %arg1[%c320, %c0_5] : memref<336x128xbf16, #tpu.memory_space<vmem>>, vector<1x128xbf16>
    %7 = arith.extf %6 : vector<1x128xbf16> to vector<1x128xf32>
    %8 = tpu.iota {dimensions = array<i32: 1>} : vector<1x128xi32>
    %9 = arith.sitofp %8 : vector<1x128xi32> to vector<1x128xf32>
    %c32_i32 = arith.constant 32 : i32
    %10 = vector.broadcast %c32_i32 : i32 to vector<1x128xi32>
    %11 = arith.cmpi sge, %8, %10 : vector<1x128xi32>
    %c40_i32 = arith.constant 40 : i32
    %12 = vector.broadcast %c40_i32 : i32 to vector<1x128xi32>
    %13 = arith.cmpi slt, %8, %12 : vector<1x128xi32>
    %14 = arith.andi %11, %13 : vector<1x128xi1>
    %15 = arith.extui %14 : vector<1x128xi1> to vector<1x128xi32>
    %16 = arith.sitofp %15 : vector<1x128xi32> to vector<1x128xf32>
    %cst = arith.constant dense<0.000000e+00> : vector<2x128xf32>
    %17 = tpu.matmul %1, %2, %cst {dimension_numbers = #tpu.dot_dimension_numbers<[1], [0], [0], [1], [0, 0, 1, 1], [], []>} : vector<2x256xbf16>, vector<256x128xbf16>, vector<2x128xf32> -> vector<2x128xf32>
    %18 = vector.broadcast %5 : vector<1x128xf32> to vector<2x128xf32>
    %19 = arith.addf %17, %18 : vector<2x128xf32>
    %cst_6 = arith.constant 0.000000e+00 : f32
    %20 = vector.broadcast %cst_6 : f32 to vector<2x128xf32>
    %21 = arith.maximumf %19, %20 : vector<2x128xf32>
    %22 = vector.extract_strided_slice %21 {offsets = [0, 0], sizes = [2, 48], strides = [1, 1]} : vector<2x128xf32> to vector<2x48xf32>
    %23 = arith.truncf %22 : vector<2x48xf32> to vector<2x48xbf16>
    %cst_7 = arith.constant dense<0.000000e+00> : vector<2x128xf32>
    %24 = tpu.matmul %23, %3, %cst_7 {dimension_numbers = #tpu.dot_dimension_numbers<[1], [0], [0], [1], [0, 0, 1, 1], [], []>} : vector<2x48xbf16>, vector<48x128xbf16>, vector<2x128xf32> -> vector<2x128xf32>
    %25 = vector.broadcast %7 : vector<1x128xf32> to vector<2x128xf32>
    %26 = arith.addf %24, %25 : vector<2x128xf32>
    %cst_8 = arith.constant 0xFF800000 : f32
    %27 = vector.shape_cast %14 : vector<1x128xi1> to vector<1x128xi1>
    %28 = vector.broadcast %27 : vector<1x128xi1> to vector<2x128xi1>
    %29 = vector.broadcast %cst_8 : f32 to vector<2x128xf32>
    %30 = arith.select %28, %17, %29 : vector<2x128xi1>, vector<2x128xf32>
    %cst_9 = arith.constant dense<0xFF800000> : vector<2xf32>
    %31 = vector.multi_reduction <maximumf>, %30, %cst_9 [1] : vector<2x128xf32> to vector<2xf32>
    %32 = vector.shape_cast %31 : vector<2xf32> to vector<2x1xf32>
    %33 = vector.broadcast %32 : vector<2x1xf32> to vector<2x128xf32>
    %34 = arith.cmpf oeq, %30, %33 : vector<2x128xf32>
    %cst_10 = arith.constant 1.280000e+02 : f32
    %35 = vector.shape_cast %9 : vector<1x128xf32> to vector<1x128xf32>
    %36 = vector.broadcast %35 : vector<1x128xf32> to vector<2x128xf32>
    %37 = vector.broadcast %cst_10 : f32 to vector<2x128xf32>
    %38 = arith.select %34, %36, %37 : vector<2x128xi1>, vector<2x128xf32>
    %cst_11 = arith.constant dense<0x7F800000> : vector<2xf32>
    %39 = vector.multi_reduction <minimumf>, %38, %cst_11 [1] : vector<2x128xf32> to vector<2xf32>
    %40 = vector.shape_cast %39 : vector<2xf32> to vector<2x1xf32>
    %41 = vector.broadcast %9 : vector<1x128xf32> to vector<2x128xf32>
    %42 = vector.broadcast %40 : vector<2x1xf32> to vector<2x128xf32>
    %43 = arith.cmpf oeq, %41, %42 : vector<2x128xf32>
    %cst_12 = arith.constant 0xFF800000 : f32
    %44 = vector.broadcast %cst_12 : f32 to vector<2x128xf32>
    %45 = arith.select %43, %44, %30 : vector<2x128xi1>, vector<2x128xf32>
    %cst_13 = arith.constant dense<0xFF800000> : vector<2xf32>
    %46 = vector.multi_reduction <maximumf>, %45, %cst_13 [1] : vector<2x128xf32> to vector<2xf32>
    %47 = vector.shape_cast %46 : vector<2xf32> to vector<2x1xf32>
    %48 = vector.broadcast %47 : vector<2x1xf32> to vector<2x128xf32>
    %49 = arith.cmpf oeq, %45, %48 : vector<2x128xf32>
    %cst_14 = arith.constant 1.280000e+02 : f32
    %50 = vector.shape_cast %9 : vector<1x128xf32> to vector<1x128xf32>
    %51 = vector.broadcast %50 : vector<1x128xf32> to vector<2x128xf32>
    %52 = vector.broadcast %cst_14 : f32 to vector<2x128xf32>
    %53 = arith.select %49, %51, %52 : vector<2x128xi1>, vector<2x128xf32>
    %cst_15 = arith.constant dense<0x7F800000> : vector<2xf32>
    %54 = vector.multi_reduction <minimumf>, %53, %cst_15 [1] : vector<2x128xf32> to vector<2xf32>
    %55 = vector.shape_cast %54 : vector<2xf32> to vector<2x1xf32>
    %56 = vector.broadcast %9 : vector<1x128xf32> to vector<2x128xf32>
    %57 = vector.broadcast %55 : vector<2x1xf32> to vector<2x128xf32>
    %58 = arith.cmpf oeq, %56, %57 : vector<2x128xf32>
    %cst_16 = arith.constant 0xFF800000 : f32
    %59 = vector.broadcast %cst_16 : f32 to vector<2x128xf32>
    %60 = arith.select %58, %59, %45 : vector<2x128xi1>, vector<2x128xf32>
    %cst_17 = arith.constant dense<0xFF800000> : vector<2xf32>
    %61 = vector.multi_reduction <maximumf>, %60, %cst_17 [1] : vector<2x128xf32> to vector<2xf32>
    %62 = vector.shape_cast %61 : vector<2xf32> to vector<2x1xf32>
    %63 = vector.broadcast %62 : vector<2x1xf32> to vector<2x128xf32>
    %64 = arith.cmpf oeq, %60, %63 : vector<2x128xf32>
    %cst_18 = arith.constant 1.280000e+02 : f32
    %65 = vector.shape_cast %9 : vector<1x128xf32> to vector<1x128xf32>
    %66 = vector.broadcast %65 : vector<1x128xf32> to vector<2x128xf32>
    %67 = vector.broadcast %cst_18 : f32 to vector<2x128xf32>
    %68 = arith.select %64, %66, %67 : vector<2x128xi1>, vector<2x128xf32>
    %cst_19 = arith.constant dense<0x7F800000> : vector<2xf32>
    %69 = vector.multi_reduction <minimumf>, %68, %cst_19 [1] : vector<2x128xf32> to vector<2xf32>
    %70 = vector.shape_cast %69 : vector<2xf32> to vector<2x1xf32>
    %71 = vector.broadcast %9 : vector<1x128xf32> to vector<2x128xf32>
    %72 = vector.broadcast %70 : vector<2x1xf32> to vector<2x128xf32>
    %73 = arith.cmpf oeq, %71, %72 : vector<2x128xf32>
    %cst_20 = arith.constant 0xFF800000 : f32
    %74 = vector.broadcast %cst_20 : f32 to vector<2x128xf32>
    %75 = arith.select %73, %74, %60 : vector<2x128xi1>, vector<2x128xf32>
    %cst_21 = arith.constant dense<0xFF800000> : vector<2xf32>
    %76 = vector.multi_reduction <maximumf>, %75, %cst_21 [1] : vector<2x128xf32> to vector<2xf32>
    %77 = vector.shape_cast %76 : vector<2xf32> to vector<2x1xf32>
    %78 = vector.broadcast %77 : vector<2x1xf32> to vector<2x128xf32>
    %79 = arith.cmpf oeq, %75, %78 : vector<2x128xf32>
    %cst_22 = arith.constant 1.280000e+02 : f32
    %80 = vector.shape_cast %9 : vector<1x128xf32> to vector<1x128xf32>
    %81 = vector.broadcast %80 : vector<1x128xf32> to vector<2x128xf32>
    %82 = vector.broadcast %cst_22 : f32 to vector<2x128xf32>
    %83 = arith.select %79, %81, %82 : vector<2x128xi1>, vector<2x128xf32>
    %cst_23 = arith.constant dense<0x7F800000> : vector<2xf32>
    %84 = vector.multi_reduction <minimumf>, %83, %cst_23 [1] : vector<2x128xf32> to vector<2xf32>
    %85 = vector.shape_cast %84 : vector<2xf32> to vector<2x1xf32>
    %86 = arith.subf %32, %32 : vector<2x1xf32>
    %87 = math.exp %86 : vector<2x1xf32>
    %88 = arith.subf %47, %32 : vector<2x1xf32>
    %89 = math.exp %88 : vector<2x1xf32>
    %90 = arith.subf %62, %32 : vector<2x1xf32>
    %91 = math.exp %90 : vector<2x1xf32>
    %92 = arith.subf %77, %32 : vector<2x1xf32>
    %93 = math.exp %92 : vector<2x1xf32>
    %94 = arith.addf %87, %89 : vector<2x1xf32>
    %95 = arith.addf %94, %91 : vector<2x1xf32>
    %96 = arith.addf %95, %93 : vector<2x1xf32>
    %cst_24 = arith.constant 0.000000e+00 : f32
    %97 = vector.broadcast %cst_24 : f32 to vector<2x128xf32>
    %98 = vector.broadcast %9 : vector<1x128xf32> to vector<2x128xf32>
    %99 = vector.broadcast %40 : vector<2x1xf32> to vector<2x128xf32>
    %100 = arith.cmpf oeq, %98, %99 : vector<2x128xf32>
    %101 = arith.divf %87, %96 : vector<2x1xf32>
    %cst_25 = arith.constant 0.000000e+00 : f32
    %102 = vector.shape_cast %101 : vector<2x1xf32> to vector<2x1xf32>
    %103 = vector.broadcast %102 : vector<2x1xf32> to vector<2x128xf32>
    %104 = vector.broadcast %cst_25 : f32 to vector<2x128xf32>
    %105 = arith.select %100, %103, %104 : vector<2x128xi1>, vector<2x128xf32>
    %106 = arith.addf %97, %105 : vector<2x128xf32>
    %107 = vector.broadcast %9 : vector<1x128xf32> to vector<2x128xf32>
    %108 = vector.broadcast %55 : vector<2x1xf32> to vector<2x128xf32>
    %109 = arith.cmpf oeq, %107, %108 : vector<2x128xf32>
    %110 = arith.divf %89, %96 : vector<2x1xf32>
    %cst_26 = arith.constant 0.000000e+00 : f32
    %111 = vector.shape_cast %110 : vector<2x1xf32> to vector<2x1xf32>
    %112 = vector.broadcast %111 : vector<2x1xf32> to vector<2x128xf32>
    %113 = vector.broadcast %cst_26 : f32 to vector<2x128xf32>
    %114 = arith.select %109, %112, %113 : vector<2x128xi1>, vector<2x128xf32>
    %115 = arith.addf %106, %114 : vector<2x128xf32>
    %116 = vector.broadcast %9 : vector<1x128xf32> to vector<2x128xf32>
    %117 = vector.broadcast %70 : vector<2x1xf32> to vector<2x128xf32>
    %118 = arith.cmpf oeq, %116, %117 : vector<2x128xf32>
    %119 = arith.divf %91, %96 : vector<2x1xf32>
    %cst_27 = arith.constant 0.000000e+00 : f32
    %120 = vector.shape_cast %119 : vector<2x1xf32> to vector<2x1xf32>
    %121 = vector.broadcast %120 : vector<2x1xf32> to vector<2x128xf32>
    %122 = vector.broadcast %cst_27 : f32 to vector<2x128xf32>
    %123 = arith.select %118, %121, %122 : vector<2x128xi1>, vector<2x128xf32>
    %124 = arith.addf %115, %123 : vector<2x128xf32>
    %125 = vector.broadcast %9 : vector<1x128xf32> to vector<2x128xf32>
    %126 = vector.broadcast %85 : vector<2x1xf32> to vector<2x128xf32>
    %127 = arith.cmpf oeq, %125, %126 : vector<2x128xf32>
    %128 = arith.divf %93, %96 : vector<2x1xf32>
    %cst_28 = arith.constant 0.000000e+00 : f32
    %129 = vector.shape_cast %128 : vector<2x1xf32> to vector<2x1xf32>
    %130 = vector.broadcast %129 : vector<2x1xf32> to vector<2x128xf32>
    %131 = vector.broadcast %cst_28 : f32 to vector<2x128xf32>
    %132 = arith.select %127, %130, %131 : vector<2x128xi1>, vector<2x128xf32>
    %133 = arith.addf %124, %132 : vector<2x128xf32>
    %cst_29 = arith.constant 0.000000e+00 : f32
    %134 = vector.broadcast %cst_29 : f32 to vector<2x128xf32>
    %135 = arith.cmpf ogt, %133, %134 : vector<2x128xf32>
    %136 = arith.extui %135 : vector<2x128xi1> to vector<2x128xi32>
    %137 = arith.sitofp %136 : vector<2x128xi32> to vector<2x128xf32>
    %c64_i32 = arith.constant 64 : i32
    %138 = tpu.dynamic_rotate %137 by %c64_i32 dim 1 : vector<2x128xf32>, i32 -> vector<2x128xf32>
    %139 = arith.addf %133, %138 : vector<2x128xf32>
    %cst_30 = arith.constant dense<0.000000e+00> : vector<128xf32>
    %140 = vector.multi_reduction <add>, %139, %cst_30 [0] : vector<2x128xf32> to vector<128xf32>
    %141 = vector.shape_cast %140 : vector<128xf32> to vector<1x128xf32>
    %c64_i32_31 = arith.constant 64 : i32
    %142 = tpu.dynamic_rotate %141 by %c64_i32_31 dim 1 : vector<1x128xf32>, i32 -> vector<1x128xf32>
    %143 = tpu.concatenate %141, %142 in 0 : vector<1x128xf32>, vector<1x128xf32> -> vector<2x128xf32>
    %144 = vector.broadcast %16 : vector<1x128xf32> to vector<2x128xf32>
    %145 = arith.mulf %143, %144 : vector<2x128xf32>
    %cst_32 = arith.constant dense<0.000000e+00> : vector<2xf32>
    %146 = vector.multi_reduction <add>, %145, %cst_32 [1] : vector<2x128xf32> to vector<2xf32>
    %147 = vector.shape_cast %146 : vector<2xf32> to vector<2x1xf32>
    %cst_33 = arith.constant 8.000000e+00 : f32
    %148 = vector.broadcast %cst_33 : f32 to vector<2x1xf32>
    %149 = arith.divf %147, %148 : vector<2x1xf32>
    %150 = vector.broadcast %149 : vector<2x1xf32> to vector<2x128xf32>
    %151 = arith.subf %145, %150 : vector<2x128xf32>
    %152 = vector.broadcast %16 : vector<1x128xf32> to vector<2x128xf32>
    %153 = arith.mulf %151, %152 : vector<2x128xf32>
    %154 = arith.mulf %153, %153 : vector<2x128xf32>
    %cst_34 = arith.constant dense<0.000000e+00> : vector<2xf32>
    %155 = vector.multi_reduction <add>, %154, %cst_34 [1] : vector<2x128xf32> to vector<2xf32>
    %156 = vector.shape_cast %155 : vector<2xf32> to vector<2x1xf32>
    %cst_35 = arith.constant 7.000000e+00 : f32
    %157 = vector.broadcast %cst_35 : f32 to vector<2x1xf32>
    %158 = arith.divf %156, %157 : vector<2x1xf32>
    %159 = arith.mulf %149, %149 : vector<2x1xf32>
    %cst_36 = arith.constant 1.000000e-10 : f32
    %160 = vector.broadcast %cst_36 : f32 to vector<2x1xf32>
    %161 = arith.addf %159, %160 : vector<2x1xf32>
    %162 = arith.divf %158, %161 : vector<2x1xf32>
    %cst_37 = arith.constant dense<0.000000e+00> : vector<1xf32>
    %163 = vector.multi_reduction <add>, %162, %cst_37 [0] : vector<2x1xf32> to vector<1xf32>
    %164 = vector.shape_cast %163 : vector<1xf32> to vector<1x1xf32>
    %cst_38 = arith.constant 0.00999999977 : f32
    %165 = vector.broadcast %cst_38 : f32 to vector<1x1xf32>
    %166 = arith.mulf %164, %165 : vector<1x1xf32>
    %167 = arith.addf %26, %133 : vector<2x128xf32>
    %c48_i32 = arith.constant 48 : i32
    %168 = vector.broadcast %c48_i32 : i32 to vector<1x128xi32>
    %169 = arith.cmpi eq, %8, %168 : vector<1x128xi32>
    %cst_39 = arith.constant 0.000000e+00 : f32
    %170 = vector.shape_cast %166 : vector<1x1xf32> to vector<1x1xf32>
    %171 = vector.broadcast %170 : vector<1x1xf32> to vector<1x128xf32>
    %172 = vector.broadcast %cst_39 : f32 to vector<1x128xf32>
    %173 = arith.select %169, %171, %172 : vector<1x128xi1>, vector<1x128xf32>
    %174 = vector.broadcast %173 : vector<1x128xf32> to vector<2x128xf32>
    %175 = arith.addf %167, %174 : vector<2x128xf32>
    %c0_40 = arith.constant 0 : index
    %c0_41 = arith.constant 0 : index
    %176 = vector.load %arg2[%c0_40, %c0_41] : memref<2x128xf32, #tpu.memory_space<vmem>>, vector<2x128xf32>
    tpu.vector_store %arg2[%c0_40, %c0_41], %175 {strides = array<i32>} : memref<2x128xf32, #tpu.memory_space<vmem>>, vector<2x128xf32>,
    return
  }
}

</mosaic_0001>

<llo_original>
// kernel: moe_forward.1
$region0: #{moe_forward.1}
  #allocation0 [shape = 'u32[]', space=smem, size = 0x4, offset = 0x4, fixed_abs, tag = 'smem constant byte address 0x4 - core index']
  #allocation1 [shape = 'u32[144,128]{1,0:T(1,128)}', space=vmem, size = 0x12000, scoped, tag = 'internal scratch']
  %s0 = inlined_call_operand.vmem [shape: f32[2,256], index: 0, kind: input, shape index: {}]
  %s1 = inlined_call_operand.hbm [shape: bf16[336,128], index: 1, kind: input, shape index: {}]
  %s2 = inlined_call_operand.vmem [shape: f32[2,128], index: 2, kind: output, shape index: {}]
  %s3 = sld [smem:[#allocation0]]
  $region22: #{moe_forward.1} parent=0
    _
  %s5 = ssub.s32 1, %s3
  %s6 = scalar_select 0, %s5, %s3
  $region1: #{moe_forward.1} parent=0
    #allocation2 [shape = 'u8[86016]{0}', space=vmem, size = 0x15000, scoped, tag = 'input window, operand 1, single buffered']
    #allocation3 [shape = 's32[1]{0}', space=sflag, size = 0x4, scoped, tag = 'scoped memory for moe_forward.1']
    %7 = vsyncpa [#allocation3], 0
    // Predicated region
    $region2: #{moe_forward.1} parent=1 // pred_check
      _
    $region3: #{moe_forward.1} parent=1 // pred_check_branch
      %9 = sbr.rel (0) target = $region5
    $region4: #{moe_forward.1} parent=1 // pred_region
      _
    $region5: #{moe_forward.1} parent=1 // pred_fallthru
      _
    // Predicated region
    $region6: #{moe_forward.1} parent=1 // pred_check
      _
    $region7: #{moe_forward.1} parent=1 // pred_check_branch
      %11 = sbr.rel (0) target = $region9
    $region8: #{moe_forward.1} parent=1 // pred_region
      %s13 = ssub.s32 2688, 2688
      %14 = vsyncadd [#allocation3], %s13
      %s15 = sshll.u32 [#allocation2], 4
      %s16 = int_to_ptr.vmem [resolvable:$true] %s15
      %21 = dma.hbm_to_vmem [thread:$0]  %s1, 2688, %s16, [#allocation3], 64, 64, 4
    $region9: #{moe_forward.1} parent=1 // pred_fallthru
      _
    // Predicated region
    $region10: #{moe_forward.1} parent=1 // pred_check
      _
    $region11: #{moe_forward.1} parent=1 // pred_check_branch
      %23 = sbr.rel (0) target = $region13
    $region12: #{moe_forward.1} parent=1 // pred_region
      %24 = dma.done [#allocation3], 2688
    $region13: #{moe_forward.1} parent=1 // pred_fallthru
      _
    %v26 = vld [vmem:[%s0] sm:$0xf]
    %v29 = vunpack.c.l.s4 1983009808
    %v30 = vunpack.c.0.s8 %v29
    %v31 = vlaneseq
    %v32 = vshrl.u32 %v31, 7
    %v33 = vsub.s32 %v30, %v32
    %v34 = vrot.slane %v26, %v33
    %v35 = vcombine.high %v34, %v34
    %v38 = vpack.c.bf16 %v34, %v34
    %v39 = vpack.c.bf16 %v35, %v35
    %v40 = vld [vmem:[#allocation2] sm:$0xf]
    %v41 = vld [vmem:[#allocation2 + $0x4] sm:$0xf]
    %v42 = vld [vmem:[#allocation2 + $0x8] sm:$0xf]
    %v43 = vld [vmem:[#allocation2 + $0xc] sm:$0xf]
    %v44 = vld [vmem:[#allocation2 + $0x10] sm:$0xf]
    %v45 = vld [vmem:[#allocation2 + $0x14] sm:$0xf]
    %v46 = vld [vmem:[#allocation2 + $0x18] sm:$0xf]
    %v47 = vld [vmem:[#allocation2 + $0x1c] sm:$0xf]
    %v48 = vld [vmem:[#allocation2 + $0x20] sm:$0xf]
    %v49 = vld [vmem:[#allocation2 + $0x24] sm:$0xf]
    %v50 = vld [vmem:[#allocation2 + $0x28] sm:$0xf]
    %v51 = vld [vmem:[#allocation2 + $0x2c] sm:$0xf]
    %v52 = vld [vmem:[#allocation2 + $0x30] sm:$0xf]
    %v53 = vld [vmem:[#allocation2 + $0x34] sm:$0xf]
    %v54 = vld [vmem:[#allocation2 + $0x38] sm:$0xf]
    %v55 = vld [vmem:[#allocation2 + $0x3c] sm:$0xf]
    %v56 = vld [vmem:[#allocation2 + $0x40] sm:$0xf]
    %v57 = vld [vmem:[#allocation2 + $0x44] sm:$0xf]
    %v58 = vld [vmem:[#allocation2 + $0x48] sm:$0xf]
    %v59 = vld [vmem:[#allocation2 + $0x4c] sm:$0xf]
    %v60 = vld [vmem:[#allocation2 + $0x50] sm:$0xf]
    %v61 = vld [vmem:[#allocation2 + $0x54] sm:$0xf]
    %v62 = vld [vmem:[#allocation2 + $0x58] sm:$0xf]
    %v63 = vld [vmem:[#allocation2 + $0x5c] sm:$0xf]
    %v64 = vld [vmem:[#allocation2 + $0x60] sm:$0xf]
    %v65 = vld [vmem:[#allocation2 + $0x64] sm:$0xf]
    %v66 = vld [vmem:[#allocation2 + $0x68] sm:$0xf]
    %v67 = vld [vmem:[#allocation2 + $0x6c] sm:$0xf]
    %v68 = vld [vmem:[#allocation2 + $0x70] sm:$0xf]
    %v69 = vld [vmem:[#allocation2 + $0x74] sm:$0xf]
    %v70 = vld [vmem:[#allocation2 + $0x78] sm:$0xf]
    %v71 = vld [vmem:[#allocation2 + $0x7c] sm:$0xf]
    %v72 = vld [vmem:[#allocation2 + $0x80] sm:$0xf]
    %v73 = vld [vmem:[#allocation2 + $0x84] sm:$0xf]
    %v74 = vld [vmem:[#allocation2 + $0x88] sm:$0xf]
    %v75 = vld [vmem:[#allocation2 + $0x8c] sm:$0xf]
    %v76 = vld [vmem:[#allocation2 + $0x90] sm:$0xf]
    %v77 = vld [vmem:[#allocation2 + $0x94] sm:$0xf]
    %v78 = vld [vmem:[#allocation2 + $0x98] sm:$0x1]
    %v79 = vunpack.c.l.bf16 %v78
    %v80 = vld [vmem:[#allocation2 + $0xa0] sm:$0x1]
    %v81 = vunpack.c.l.bf16 %v80
    %v82 = vlaneseq
    %v83 = vand.u32 %v82, 127
    %v84 = vcvt.s32.f32 %v83
    %vm85 = vcmp.ge.s32.totalorder %v83, 32
    %vm86 = vcmp.lt.s32.totalorder %v83, 40
    %vm87 = vmand %vm85, %vm86
    %v88 = vsel %vm87, 1, 0
    %v89 = vcvt.s32.f32 %v88
    %v122 = vunpack.c.l.b16 %v40
    %v123 = vunpack.c.l.b16 %v41
    %v124 = vunpack.c.l.b16 %v42
    %v125 = vunpack.c.l.b16 %v43
    %v126 = vunpack.c.l.b16 %v44
    %v127 = vunpack.c.l.b16 %v45
    %v128 = vunpack.c.l.b16 %v46
    %v129 = vunpack.c.l.b16 %v47
    %v130 = vunpack.c.l.b16 %v48
    %v131 = vunpack.c.l.b16 %v49
    %v132 = vunpack.c.l.b16 %v50
    %v133 = vunpack.c.l.b16 %v51
    %v134 = vunpack.c.l.b16 %v52
    %v135 = vunpack.c.l.b16 %v53
    %v136 = vunpack.c.l.b16 %v54
    %v137 = vunpack.c.l.b16 %v55
    %v138 = vunpack.c.l.b16 %v56
    %v139 = vunpack.c.l.b16 %v57
    %v140 = vunpack.c.l.b16 %v58
    %v141 = vunpack.c.l.b16 %v59
    %v142 = vunpack.c.l.b16 %v60
    %v143 = vunpack.c.l.b16 %v61
    %v144 = vunpack.c.l.b16 %v62
    %v145 = vunpack.c.l.b16 %v63
    %v146 = vunpack.c.l.b16 %v64
    %v147 = vunpack.c.l.b16 %v65
    %v148 = vunpack.c.l.b16 %v66
    %v149 = vunpack.c.l.b16 %v67
    %v150 = vunpack.c.l.b16 %v68
    %v151 = vunpack.c.l.b16 %v69
    %v152 = vunpack.c.l.b16 %v70
    %v153 = vunpack.c.l.b16 %v71
    %v154 = vpack.c.b16 %v123, %v122
    %v155 = vpack.c.b16 %v125, %v124
    %v156 = vpack.c.b16 %v127, %v126
    %v157 = vpack.c.b16 %v129, %v128
    %v158 = vpack.c.b16 %v131, %v130
    %v159 = vpack.c.b16 %v133, %v132
    %v160 = vpack.c.b16 %v135, %v134
    %v161 = vpack.c.b16 %v137, %v136
    %v162 = vpack.c.b16 %v139, %v138
    %v163 = vpack.c.b16 %v141, %v140
    %v164 = vpack.c.b16 %v143, %v142
    %v165 = vpack.c.b16 %v145, %v144
    %v166 = vpack.c.b16 %v147, %v146
    %v167 = vpack.c.b16 %v149, %v148
    %v168 = vpack.c.b16 %v151, %v150
    %v169 = vpack.c.b16 %v153, %v152
    %186 = vmatprep.subr.bf16.mxu0 0
    %187 = vmatpush1.bf16.msra.mxu0 %v154
    %188 = vmatprep.subr.bf16.mxu0 0
    %189 = vmatpush1.bf16.msra.mxu0 %v155
    %190 = vmatprep.subr.bf16.mxu0 0
    %191 = vmatpush1.bf16.msra.mxu0 %v156
    %192 = vmatprep.subr.bf16.mxu0 0
    %193 = vmatpush1.bf16.msra.mxu0 %v157
    %194 = vmatprep.subr.bf16.mxu0 0
    %195 = vmatpush1.bf16.msra.mxu0 %v158
    %196 = vmatprep.subr.bf16.mxu0 0
    %197 = vmatpush1.bf16.msra.mxu0 %v159
    %198 = vmatprep.subr.bf16.mxu0 0
    %199 = vmatpush1.bf16.msra.mxu0 %v160
    %200 = vmatprep.subr.bf16.mxu0 0
    %201 = vmatpush1.bf16.msra.mxu0 %v161
    %202 = vmatprep.subr.bf16.mxu0 0
    %203 = vmatpush1.bf16.msra.mxu0 %v162
    %204 = vmatprep.subr.bf16.mxu0 0
    %205 = vmatpush1.bf16.msra.mxu0 %v163
    %206 = vmatprep.subr.bf16.mxu0 0
    %207 = vmatpush1.bf16.msra.mxu0 %v164
    %208 = vmatprep.subr.bf16.mxu0 0
    %209 = vmatpush1.bf16.msra.mxu0 %v165
    %210 = vmatprep.subr.bf16.mxu0 0
    %211 = vmatpush1.bf16.msra.mxu0 %v166
    %212 = vmatprep.subr.bf16.mxu0 0
    %213 = vmatpush1.bf16.msra.mxu0 %v167
    %214 = vmatprep.subr.bf16.mxu0 0
    %215 = vmatpush1.bf16.msra.mxu0 %v168
    %216 = vmatprep.subr.bf16.mxu0 0
    %217 = vmatpush1.bf16.msra.mxu0 %v169
    %218 = vmatprep.mubr.bf16.mxu0 %v39
    %219 = vmatmul.mubr.bf16.gmra.mrb[0].mxu0 %v38
    %v220 = vpop.f32.mrb[0].mxu0
    %v221 = vadd.f32 0.0, %v220
    %v222 = vpop.f32.mrb[0].mxu0
    %v223 = vpop.f32.mrb[0].mxu0
    %v224 = vpop.f32.mrb[0].mxu0
    %225 = vdwg.mxu0
    %v226 = vlaneseq
    %v227 = vshrl.u32 %v226, 7
    %v228 = vsub.s32 0, %v227
    %v229 = vrot.slane %v79, %v228
    %v230 = vadd.f32 %v221, %v229
    %v231 = vmax.f32 %v230, 0.0
    %v232 = vpack.c.bf16 %v231, %v231
    %v233 = vlaneseq
    %v234 = vshrl.u32 %v233, 7
    %v235 = vsub.s32 0, %v234
    %v236 = vrot.slane %v81, %v235
    %v243 = vunpack.c.l.b16 %v72
    %v244 = vunpack.c.l.b16 %v73
    %v245 = vunpack.c.l.b16 %v74
    %v246 = vunpack.c.l.b16 %v75
    %v247 = vunpack.c.l.b16 %v76
    %v248 = vunpack.c.l.b16 %v77
    %v249 = vpack.c.b16 %v244, %v243
    %v250 = vpack.c.b16 %v246, %v245
    %v251 = vpack.c.b16 %v248, %v247
    %vm255 = vcmask 392192
    %v257 = vsel %vm255, %v232, 0
    %259 = vmatprep.subr.bf16.mxu0 0
    %260 = vmatpush1.bf16.msra.mxu0 %v249
    %261 = vmatprep.subr.bf16.mxu0 0
    %262 = vmatpush1.bf16.msra.mxu0 %v250
    %263 = vmatprep.subr.bf16.mxu0 0
    %264 = vmatpush1.bf16.msra.mxu0 %v251
    %265 = vmatprep.subr.bf16.mxu0 0
    %266 = vmatpush1.bf16.msra.mxu0 0
    %267 = vmatprep.subr.bf16.mxu0 0
    %268 = vmatpush1.bf16.msra.mxu0 0
    %269 = vmatprep.subr.bf16.mxu0 0
    %270 = vmatpush1.bf16.msra.mxu0 0
    %271 = vmatprep.subr.bf16.mxu0 0
    %272 = vmatpush1.bf16.msra.mxu0 0
    %273 = vmatprep.subr.bf16.mxu0 0
    %274 = vmatpush1.bf16.msra.mxu0 0
    %275 = vmatprep.subr.bf16.mxu0 0
    %276 = vmatpush1.bf16.msra.mxu0 0
    %277 = vmatprep.subr.bf16.mxu0 0
    %278 = vmatpush1.bf16.msra.mxu0 0
    %279 = vmatprep.subr.bf16.mxu0 0
    %280 = vmatpush1.bf16.msra.mxu0 0
    %281 = vmatprep.subr.bf16.mxu0 0
    %282 = vmatpush1.bf16.msra.mxu0 0
    %283 = vmatprep.subr.bf16.mxu0 0
    %284 = vmatpush1.bf16.msra.mxu0 0
    %285 = vmatprep.subr.bf16.mxu0 0
    %286 = vmatpush1.bf16.msra.mxu0 0
    %287 = vmatprep.subr.bf16.mxu0 0
    %288 = vmatpush1.bf16.msra.mxu0 0
    %289 = vmatprep.subr.bf16.mxu0 0
    %290 = vmatpush1.bf16.msra.mxu0 0
    %291 = vmatprep.mubr.bf16.mxu0 0
    %292 = vmatmul.mubr.bf16.gmra.mrb[0].mxu0 %v257
    %v293 = vpop.f32.mrb[0].mxu0
    %v294 = vadd.f32 %v236, %v293
    %v295 = vpop.f32.mrb[0].mxu0
    %v296 = vpop.f32.mrb[0].mxu0
    %v297 = vpop.f32.mrb[0].mxu0
    %298 = vdwg.mxu0
    %vm299 = vcmp.eq.s32.totalorder %v88, 1
    %v300 = vsel %vm299, %v221, -inf
    %vm301 = vcmask 1041408
    %v302 = vsel %vm301, %v300, -inf
    %303 = vmax.xlane.f32.xlu0 %v302
    %v304 = vpop.xlane.xlu0 %303
    %vm305 = vcmp.eq.f32.partialorder %v300, %v304
    %v306 = vsel %vm305, %v84, 128.0
    %v307 = vsel %vm301, %v306, inf
    %308 = vmin.xlane.f32.xlu0 %v307
    %v309 = vpop.xlane.xlu0 %308
    %vm310 = vcmp.eq.f32.partialorder %v84, %v309
    %v311 = vsel %vm310, -inf, %v300
    %v312 = vsel %vm301, %v311, -inf
    %313 = vmax.xlane.f32.xlu0 %v312
    %v314 = vpop.xlane.xlu0 %313
    %vm315 = vcmp.eq.f32.partialorder %v311, %v314
    %v316 = vsel %vm315, %v84, 128.0
    %v317 = vsel %vm301, %v316, inf
    %318 = vmin.xlane.f32.xlu0 %v317
    %v319 = vpop.xlane.xlu0 %318
    %vm320 = vcmp.eq.f32.partialorder %v84, %v319
    %v321 = vsel %vm320, -inf, %v311
    %v322 = vsel %vm301, %v321, -inf
    %323 = vmax.xlane.f32.xlu0 %v322
    %v324 = vpop.xlane.xlu0 %323
    %vm325 = vcmp.eq.f32.partialorder %v321, %v324
    %v326 = vsel %vm325, %v84, 128.0
    %v327 = vsel %vm301, %v326, inf
    %328 = vmin.xlane.f32.xlu0 %v327
    %v329 = vpop.xlane.xlu0 %328
    %vm330 = vcmp.eq.f32.partialorder %v84, %v329
    %v331 = vsel %vm330, -inf, %v321
    %v332 = vsel %vm301, %v331, -inf
    %333 = vmax.xlane.f32.xlu0 %v332
    %v334 = vpop.xlane.xlu0 %333
    %vm335 = vcmp.eq.f32.partialorder %v331, %v334
    %v336 = vsel %vm335, %v84, 128.0
    %v337 = vsel %vm301, %v336, inf
    %338 = vmin.xlane.f32.xlu0 %v337
    %v339 = vpop.xlane.xlu0 %338
    %v340 = vsub.f32 %v304, %v304
    %v341 = vmul.f32 %v340, 1.442695
    %v342 = vpow.pop %v341
    %v343 = vsub.f32 %v314, %v304
    %v344 = vmul.f32 %v343, 1.442695
    %v345 = vpow.pop %v344
    %v346 = vsub.f32 %v324, %v304
    %v347 = vmul.f32 %v346, 1.442695
    %v348 = vpow.pop %v347
    %v349 = vsub.f32 %v334, %v304
    %v350 = vmul.f32 %v349, 1.442695
    %v351 = vpow.pop %v350
    %v352 = vadd.f32 %v342, %v345
    %v353 = vadd.f32 %v352, %v348
    %v354 = vadd.f32 %v353, %v351
    %v355 = vrcp.pop %v354
    %v356 = vmul.f32 %v342, %v355
    %v357 = vsel %vm310, %v356, 0.0
    %v358 = vadd.f32 %v357, 0.0
    %v359 = vmul.f32 %v345, %v355
    %v360 = vsel %vm320, %v359, 0.0
    %v361 = vadd.f32 %v358, %v360
    %v362 = vmul.f32 %v348, %v355
    %v363 = vsel %vm330, %v362, 0.0
    %v364 = vadd.f32 %v361, %v363
    %vm365 = vcmp.eq.f32.partialorder %v84, %v339
    %v366 = vmul.f32 %v351, %v355
    %v367 = vsel %vm365, %v366, 0.0
    %v368 = vadd.f32 %v364, %v367
    %vm369 = vcmp.gt.f32.partialorder %v368, 0.0
    %v370 = vsel %vm369, 1, 0
    %v371 = vcvt.s32.f32 %v370
    %372 = vrot.lane.b32.xlu0 %v371, 64
    %v373 = vpop.permute.xlu0 %372
    %v374 = vadd.f32 %v368, %v373
    %v375 = vsel %vm301, %v374, 0.0
    %v376 = vrot.slane %v375, 4
    %v377 = vadd.f32 %v375, %v376
    %v378 = vrot.slane %v377, 2
    %v379 = vadd.f32 %v377, %v378
    %v380 = vrot.slane %v379, 1
    %v381 = vadd.f32 %v379, %v380
    %382 = vrot.lane.b32.xlu0 %v381, 64
    %v383 = vpop.permute.xlu0 %382
    %v385 = vrot.slane %v383, 7
    %vm387 = vcmask 1040384
    %v388 = vsel %vm387, %v381, %v385
    %v389 = vmul.f32 %v388, %v89
    %v390 = vsel %vm301, %v389, 0.0
    %391 = vadd.xlane.f32.xlu0 %v390
    %v392 = vpop.xlane.xlu0 %391
    %v393 = vrcp.pop 8.0
    %v394 = vmul.f32 %v392, %v393
    %v395 = vsub.f32 %v389, %v394
    %v396 = vmul.f32 %v395, %v89
    %v397 = vmul.f32 %v396, %v396
    %v398 = vsel %vm301, %v397, 0.0
    %399 = vadd.xlane.f32.xlu0 %v398
    %v400 = vpop.xlane.xlu0 %399
    %v401 = vrcp.pop 7.0
    %v402 = vmul.f32 %v400, %v401
    %v403 = vmul.f32 %v394, %v394
    %v404 = vadd.f32 %v403, 1e-10
    %v405 = vrcp.pop %v404
    %v406 = vmul.f32 %v402, %v405
    %v407 = vsel %vm301, %v406, 0.0
    %v408 = vrot.slane %v407, 4
    %v409 = vadd.f32 %v407, %v408
    %v410 = vrot.slane %v409, 2
    %v411 = vadd.f32 %v409, %v410
    %v412 = vrot.slane %v411, 1
    %v413 = vadd.f32 %v411, %v412
    %v414 = vmul.f32 %v413, 0.01
    %v415 = vadd.f32 %v294, %v368
    %vm416 = vcmp.eq.s32.totalorder %v83, 48
    %v417 = vsel %vm416, %v414, 0.0
    %v418 = vadd.f32 %v415, %v417
    %419 = vst [vmem:[%s2] sm:$0x3] %v418
    // Predicated region
    $region14: #{moe_forward.1} parent=1 // pred_check
      _
    $region15: #{moe_forward.1} parent=1 // pred_check_branch
      %421 = sbr.rel (0) target = $region17
    $region16: #{moe_forward.1} parent=1 // pred_region
      _
    $region17: #{moe_forward.1} parent=1 // pred_fallthru
      _
    // Predicated region
    $region18: #{moe_forward.1} parent=1 // pred_check
      _
    $region19: #{moe_forward.1} parent=1 // pred_check_branch
      %423 = sbr.rel (0) target = $region21
    $region20: #{moe_forward.1} parent=1 // pred_region
      _
    $region21: #{moe_forward.1} parent=1 // pred_fallthru
      _
    %424 = vsyncpa [#allocation3], 1

</llo_original>
